<compile_context>
chip_gen: v5e
topology: v5e:2x2
jax: 0.10.0
libtpu: 0.0.40
codegen_flags: <defaults>
</compile_context>

<pallas_src>
import functools

import jax
import jax.numpy as jnp
from jax.experimental import pallas as pl
from jax.experimental.pallas import tpu as pltpu

LN_EPS = 1e-5                      # PyTorch nn.LayerNorm default
VMEM_LIMIT_BYTES = 32 * 1024 * 1024


def seq_pool_kernel(x_ref, p_ref, gamma_ref, beta_ref, o_ref, *, use_mxu):
    # x_ref:     (TB, S, E)  batch-row block, input dtype
    # p_ref:     (E, 128)    packed MXU RHS [1/E, gwc, 0...]      (use_mxu=True)
    #            (1, E)      centred gamma*w vector (f32)         (use_mxu=False)
    # gamma_ref: (1, E) f32, beta_ref: (1, E) f32
    # o_ref:     (TB, E)
    x = x_ref[...]
    tb, s, e = x.shape
    inv_e = 1.0 / e

    # Row second moment (VPU multiply in native dtype, f32 accumulation).
    s2 = jnp.sum((x * x).astype(jnp.float32), axis=-1, keepdims=True)      # (TB,S,1)

    if use_mxu:
        # One matmul on the otherwise idle MXU yields mean (RHS col 0 = 1/E) and the
        # centred attention-pool dot product (RHS col 1 = gamma*w - mean(gamma*w)).
        mm = jnp.dot(x.reshape(tb * s, e), p_ref[...],
                     preferred_element_type=jnp.float32)                   # (TB*S,128)
        mm = mm.reshape(tb, s, 128)
        mean = mm[:, :, 0:1]                                               # (TB,S,1)
        tc = mm[:, :, 1:2]                                                 # (TB,S,1)
    else:
        gwc = p_ref[...].astype(x.dtype)                                   # (1, E)
        mean = jnp.sum(x.astype(jnp.float32), axis=-1, keepdims=True) * inv_e
        tc = jnp.sum((x * gwc).astype(jnp.float32), axis=-1, keepdims=True)

    # One-pass LayerNorm statistics (var clamped >= 0).
    var = jnp.maximum(s2 * inv_e - mean * mean, 0.0)
    rstd = jax.lax.rsqrt(var + LN_EPS)                                     # (TB,S,1)

    # softmax over the sequence axis of rstd * (centred dot); constant terms cancel.
    logits = rstd * tc                                                     # (TB,S,1)
    m = jnp.max(logits, axis=1, keepdims=True)                             # (TB,1,1)
    p = jnp.exp(logits - m)
    denom = jnp.sum(p, axis=1, keepdims=True)
    weights = p * pl.reciprocal(denom, approx=True)                        # (TB,S,1)

    # pooled = gamma * sum_s(weights*rstd*(x - mean)) + beta   (sum_s weights == 1)
    coeff = weights * rstd                                                 # (TB,S,1) f32
    cx = (coeff.astype(x.dtype) * x).astype(jnp.float32)                   # (TB,S,E)
    pooled = jnp.sum(cx, axis=1) - jnp.sum(coeff * mean, axis=1)           # (TB,E)
    o_ref[...] = (gamma_ref[...] * pooled + beta_ref[...]).astype(o_ref.dtype)


def _round_up(n, m):
    return ((n + m - 1) // m) * m


def _plan_block_b(B, S, E, in_itemsize, use_mxu):
    """Pick the batch tile TB and the (8-rounded) padded batch size."""
    b_pad = _round_up(B, 8)
    row_in = S * E * in_itemsize                    # one batch row of x, native dtype
    row_f32 = S * E * 4                             # f32 temporaries on the hot path
    row_mm = S * 128 * 4 if use_mxu else 0          # MXU result (lane-padded to 128)
    row_out = 2 * E * 4                             # double-buffered output block
    per_row = 2 * row_in + 2 * row_f32 + row_mm + row_out
    params = 2 * (E * 128 * 4 if use_mxu else E * 4) + 4 * E * 4
    budget = (20 << 20) - params                    # working-set target < vmem limit

    tb = max(8, (max(budget, per_row) // per_row) // 8 * 8)
    tb = min(tb, b_pad)
    # v7x megacore: keep >= 2 grid steps so the "parallel" axis spans both TCs.
    if b_pad >= 16:
        tb = min(tb, max(8, (b_pad // 2) // 8 * 8))
    # Snap to a divisor of b_pad: no padding beyond the round-up of B to 8.
    while b_pad % tb:
        tb -= 8
    return tb, b_pad


def sequence_pooling(x, gamma, beta, w, b=None, *, block_b=None, use_mxu=None):
    """x: (B,S,E); gamma/beta: (E,); w: (1,E) torch Linear weight; b: (1,) bias
    (unused: a per-position-constant bias cancels under the softmax over the
    sequence dimension)."""
    B, S, E = x.shape
    if use_mxu is None:
        use_mxu = (S % 8 == 0)    # flatten (TB,S,E)->(TB*S,E) is layout-free then

    gw = gamma.astype(jnp.float32) * w.reshape(E).astype(jnp.float32)
    gwc = gw - jnp.mean(gw)       # centring folds the mean*sum(gw) logit term away
    gamma2 = gamma.reshape(1, E).astype(jnp.float32)
    beta2 = beta.reshape(1, E).astype(jnp.float32)

    if use_mxu:
        p = jnp.zeros((E, 128), jnp.float32).at[:, 0].set(1.0 / E).at[:, 1].set(gwc)
        p = p.astype(x.dtype)     # MXU operands must share the input dtype
        p_spec = pl.BlockSpec((E, 128), lambda i: (0, 0))
    else:
        p = gwc.reshape(1, E)
        p_spec = pl.BlockSpec((1, E), lambda i: (0, 0))

    if block_b is not None:
        assert block_b % 8 == 0, "block_b must be a multiple of 8"
        tb = block_b
        b_pad = pl.cdiv(B, tb) * tb
    else:
        tb, b_pad = _plan_block_b(B, S, E, x.dtype.itemsize, use_mxu)

    # Pad copy only happens when B % 8 != 0 (at most 7 extra rows).
    x_in = x if b_pad == B else jnp.pad(x, ((0, b_pad - B), (0, 0), (0, 0)))

    kernel = functools.partial(seq_pool_kernel, use_mxu=use_mxu)
    out = pl.pallas_call(
        kernel,
        out_shape=jax.ShapeDtypeStruct((b_pad, E), x.dtype),
        grid_spec=pltpu.PrefetchScalarGridSpec(
            num_scalar_prefetch=0,
            grid=(b_pad // tb,),
            in_specs=[
                pl.BlockSpec((tb, S, E), lambda i: (i, 0, 0)),   # x block
                p_spec,                                          # packed RHS / gwc
                pl.BlockSpec((1, E), lambda i: (0, 0)),          # gamma
                pl.BlockSpec((1, E), lambda i: (0, 0)),          # beta
            ],
            out_specs=pl.BlockSpec((tb, E), lambda i: (i, 0)),
        ),
        compiler_params=pltpu.CompilerParams(
            dimension_semantics=("parallel",),
            vmem_limit_bytes=VMEM_LIMIT_BYTES),
    )(x_in, p, gamma2, beta2)

    return out[:B] if b_pad != B else out


def sequence_pooling_ref(x, gamma, beta, w, b):
    """Pure-JAX reference mirroring the PyTorch forward."""
    mean = jnp.mean(x, axis=-1, keepdims=True)
    var = jnp.mean((x - mean) ** 2, axis=-1, keepdims=True)
    xn = (x - mean) / jnp.sqrt(var + LN_EPS) * gamma + beta
    logits = jnp.einsum("bse,oe->bso", xn, w) + b             # (B, S, 1)
    weights = jax.nn.softmax(logits, axis=1)                  # softmax over sequence
    weights = jnp.swapaxes(weights, -1, -2)                   # (B, 1, S)
    out = jnp.matmul(weights, xn)                             # (B, 1, E)
    return jnp.squeeze(out, axis=-2)                          # (B, E)


if __name__ == "__main__":
    key = jax.random.PRNGKey(0)
    k_x, k_g, k_b, k_w, k_bias, k_x2 = jax.random.split(key, 6)

    B, S, E = 2, 8, 32
    x = jax.random.normal(k_x, (B, S, E), dtype=jnp.float32)
    gamma = 1.0 + 0.1 * jax.random.normal(k_g, (E,), dtype=jnp.float32)
    beta = 0.1 * jax.random.normal(k_b, (E,), dtype=jnp.float32)
    w = jax.random.normal(k_w, (1, E), dtype=jnp.float32) / jnp.sqrt(E)
    b = 0.05 * jax.random.normal(k_bias, (1,), dtype=jnp.float32)

    # Tolerance covers the approx EUP reciprocal, the one-pass variance and the
    # MXU (bf16-pass) rounding of the mean / logit matmul.
    TOL = dict(atol=1e-2, rtol=1e-2)

    # 1) Default (MXU-offload) path, single grid step.
    out = jax.block_until_ready(sequence_pooling(x, gamma, beta, w, b))
    ref = sequence_pooling_ref(x, gamma, beta, w, b)
    assert out.shape == (B, E)
    assert jnp.allclose(out, ref, **TOL), f"max abs err {jnp.max(jnp.abs(out - ref))}"

    # 2) VPU lane-reduce fallback path (used when S % 8 != 0).
    out_vpu = jax.block_until_ready(sequence_pooling(x, gamma, beta, w, b, use_mxu=False))
    assert jnp.allclose(out_vpu, ref, **TOL), (
        f"max abs err {jnp.max(jnp.abs(out_vpu - ref))}")

    # 3) Multi-block grid (exercises the divisor-snapped, pad-free batch tiling and
    #    the >=2-step cap for v7x megacore).
    B2 = 24
    x2 = jax.random.normal(k_x2, (B2, S, E), dtype=jnp.float32)
    out2 = jax.block_until_ready(sequence_pooling(x2, gamma, beta, w, b))
    ref2 = sequence_pooling_ref(x2, gamma, beta, w, b)
    assert out2.shape == (B2, E)
    assert jnp.allclose(out2, ref2, **TOL), (
        f"max abs err {jnp.max(jnp.abs(out2 - ref2))}")

    print("KERNEL_OK")
</pallas_src>

<mosaic_0001>
module attributes {stable_mosaic.version = 11 : i64} {
  func.func @seq_pool_kernel(%arg0: i32, %arg1: memref<8x8x32xf32, #tpu.memory_space<vmem>>, %arg2: memref<32x128xf32, #tpu.memory_space<vmem>>, %arg3: memref<1x32xf32, #tpu.memory_space<vmem>>, %arg4: memref<1x32xf32, #tpu.memory_space<vmem>>, %arg5: memref<8x32xf32, #tpu.memory_space<vmem>>) attributes {dimension_semantics = [#tpu.dimension_semantics<parallel>], iteration_bounds = array<i64: 1>, scalar_prefetch = 0 : i64, scratch_operands = 0 : i64, tpu.core_type = #tpu.core_type<tc>, window_params = [{transform_indices = @transform_0, window_bounds = array<i64: 8, 8, 32>}, {pipeline_mode = #tpu.pipeline_mode<synchronous>, transform_indices = @transform_1, window_bounds = array<i64: 32, 128>}, {pipeline_mode = #tpu.pipeline_mode<synchronous>, transform_indices = @transform_2, window_bounds = array<i64: 1, 32>}, {pipeline_mode = #tpu.pipeline_mode<synchronous>, transform_indices = @transform_3, window_bounds = array<i64: 1, 32>}, {transform_indices = @transform_4, window_bounds = array<i64: 8, 32>}]} {
    %c0 = arith.constant 0 : index
    %c0_0 = arith.constant 0 : index
    %c0_1 = arith.constant 0 : index
    %0 = vector.load %arg1[%c0, %c0_0, %c0_1] : memref<8x8x32xf32, #tpu.memory_space<vmem>>, vector<8x8x32xf32>
    %1 = arith.mulf %0, %0 : vector<8x8x32xf32>
    %cst = arith.constant dense<0.000000e+00> : vector<8x8xf32>
    %2 = vector.multi_reduction <add>, %1, %cst [2] : vector<8x8x32xf32> to vector<8x8xf32>
    %3 = vector.shape_cast %2 : vector<8x8xf32> to vector<8x8x1xf32>
    %4 = vector.shape_cast %0 : vector<8x8x32xf32> to vector<64x32xf32>
    %c0_2 = arith.constant 0 : index
    %c0_3 = arith.constant 0 : index
    %5 = vector.load %arg2[%c0_2, %c0_3] : memref<32x128xf32, #tpu.memory_space<vmem>>, vector<32x128xf32>
    %cst_4 = arith.constant dense<0.000000e+00> : vector<64x128xf32>
    %6 = tpu.matmul %4, %5, %cst_4 {dimension_numbers = #tpu.dot_dimension_numbers<[1], [0], [0], [1], [0, 0, 1, 1], [], []>} : vector<64x32xf32>, vector<32x128xf32>, vector<64x128xf32> -> vector<64x128xf32>
    %7 = vector.shape_cast %6 : vector<64x128xf32> to vector<8x8x128xf32>
    %8 = vector.extract_strided_slice %7 {offsets = [0, 0, 0], sizes = [8, 8, 1], strides = [1, 1, 1]} : vector<8x8x128xf32> to vector<8x8x1xf32>
    %9 = vector.extract_strided_slice %7 {offsets = [0, 0, 1], sizes = [8, 8, 1], strides = [1, 1, 1]} : vector<8x8x128xf32> to vector<8x8x1xf32>
    %cst_5 = arith.constant 3.125000e-02 : f32
    %10 = vector.broadcast %cst_5 : f32 to vector<8x8x1xf32>
    %11 = arith.mulf %3, %10 : vector<8x8x1xf32>
    %12 = arith.mulf %8, %8 : vector<8x8x1xf32>
    %13 = arith.subf %11, %12 : vector<8x8x1xf32>
    %cst_6 = arith.constant 0.000000e+00 : f32
    %14 = vector.broadcast %cst_6 : f32 to vector<8x8x1xf32>
    %15 = arith.maximumf %13, %14 : vector<8x8x1xf32>
    %cst_7 = arith.constant 9.99999974E-6 : f32
    %16 = vector.broadcast %cst_7 : f32 to vector<8x8x1xf32>
    %17 = arith.addf %15, %16 : vector<8x8x1xf32>
    %18 = math.rsqrt %17 : vector<8x8x1xf32>
    %19 = arith.mulf %18, %9 : vector<8x8x1xf32>
    %cst_8 = arith.constant dense<0xFF800000> : vector<8x1xf32>
    %20 = vector.multi_reduction <maximumf>, %19, %cst_8 [1] : vector<8x8x1xf32> to vector<8x1xf32>
    %21 = vector.shape_cast %20 : vector<8x1xf32> to vector<8x1x1xf32>
    %22 = vector.broadcast %21 : vector<8x1x1xf32> to vector<8x8x1xf32>
    %23 = arith.subf %19, %22 : vector<8x8x1xf32>
    %24 = math.exp %23 : vector<8x8x1xf32>
    %cst_9 = arith.constant dense<0.000000e+00> : vector<8x1xf32>
    %25 = vector.multi_reduction <add>, %24, %cst_9 [1] : vector<8x8x1xf32> to vector<8x1xf32>
    %26 = vector.shape_cast %25 : vector<8x1xf32> to vector<8x1x1xf32>
    %27 = tpu.reciprocal %26 {approx = true} : vector<8x1x1xf32> -> vector<8x1x1xf32>
    %28 = vector.broadcast %27 : vector<8x1x1xf32> to vector<8x8x1xf32>
    %29 = arith.mulf %24, %28 : vector<8x8x1xf32>
    %30 = arith.mulf %29, %18 : vector<8x8x1xf32>
    %31 = vector.broadcast %30 : vector<8x8x1xf32> to vector<8x8x32xf32>
    %32 = arith.mulf %31, %0 : vector<8x8x32xf32>
    %cst_10 = arith.constant dense<0.000000e+00> : vector<8x32xf32>
    %33 = vector.multi_reduction <add>, %32, %cst_10 [1] : vector<8x8x32xf32> to vector<8x32xf32>
    %34 = arith.mulf %30, %8 : vector<8x8x1xf32>
    %cst_11 = arith.constant dense<0.000000e+00> : vector<8x1xf32>
    %35 = vector.multi_reduction <add>, %34, %cst_11 [1] : vector<8x8x1xf32> to vector<8x1xf32>
    %36 = vector.broadcast %35 : vector<8x1xf32> to vector<8x32xf32>
    %37 = arith.subf %33, %36 : vector<8x32xf32>
    %c0_12 = arith.constant 0 : index
    %c0_13 = arith.constant 0 : index
    %38 = vector.load %arg3[%c0_12, %c0_13] : memref<1x32xf32, #tpu.memory_space<vmem>>, vector<1x32xf32>
    %39 = vector.broadcast %38 : vector<1x32xf32> to vector<8x32xf32>
    %40 = arith.mulf %39, %37 : vector<8x32xf32>
    %c0_14 = arith.constant 0 : index
    %c0_15 = arith.constant 0 : index
    %41 = vector.load %arg4[%c0_14, %c0_15] : memref<1x32xf32, #tpu.memory_space<vmem>>, vector<1x32xf32>
    %42 = vector.broadcast %41 : vector<1x32xf32> to vector<8x32xf32>
    %43 = arith.addf %40, %42 : vector<8x32xf32>
    %c0_16 = arith.constant 0 : index
    %c0_17 = arith.constant 0 : index
    %44 = vector.load %arg5[%c0_16, %c0_17] : memref<8x32xf32, #tpu.memory_space<vmem>>, vector<8x32xf32>
    tpu.vector_store %arg5[%c0_16, %c0_17], %43 {strides = array<i32>} : memref<8x32xf32, #tpu.memory_space<vmem>>, vector<8x32xf32>,
    return
  }
  func.func @transform_0(%arg0: i32) -> (i32, i32, i32) {
    %c0_i32 = arith.constant 0 : i32
    %c0_i32_0 = arith.constant 0 : i32
    %c0_i32_1 = arith.constant 0 : i32
    return %arg0, %c0_i32, %c0_i32_0 : i32, i32, i32
  }
  func.func @transform_1(%arg0: i32) -> (i32, i32) {
    %c0_i32 = arith.constant 0 : i32
    %c0_i32_0 = arith.constant 0 : i32
    %c0_i32_1 = arith.constant 0 : i32
    return %c0_i32, %c0_i32_0 : i32, i32
  }
  func.func @transform_2(%arg0: i32) -> (i32, i32) {
    %c0_i32 = arith.constant 0 : i32
    %c0_i32_0 = arith.constant 0 : i32
    %c0_i32_1 = arith.constant 0 : i32
    return %c0_i32, %c0_i32_0 : i32, i32
  }
  func.func @transform_3(%arg0: i32) -> (i32, i32) {
    %c0_i32 = arith.constant 0 : i32
    %c0_i32_0 = arith.constant 0 : i32
    %c0_i32_1 = arith.constant 0 : i32
    return %c0_i32, %c0_i32_0 : i32, i32
  }
  func.func @transform_4(%arg0: i32) -> (i32, i32) {
    %c0_i32 = arith.constant 0 : i32
    %c0_i32_0 = arith.constant 0 : i32
    return %arg0, %c0_i32 : i32, i32
  }
}

</mosaic_0001>

<llo_original>
// kernel: tpu_custom_call.1
$region0: #{tpu_custom_call.1}
  #allocation0 [shape = 'u32[]', space=smem, size = 0x4, offset = 0x4, fixed_abs, tag = 'smem constant byte address 0x4 - core index']
  #allocation1 [shape = 'u32[72,128]{1,0:T(1,128)}', space=vmem, size = 0x9000, scoped, tag = 'internal scratch']
  %s0 = inlined_call_operand.hbm [shape: f32[8,8,32], index: 0, kind: input, shape index: {}]
  %s1 = inlined_call_operand.hbm [shape: f32[32,128], index: 1, kind: input, shape index: {}]
  %s2 = inlined_call_operand.vmem [shape: f32[1,32], index: 2, kind: input, shape index: {}]
  %s3 = inlined_call_operand.vmem [shape: f32[1,32], index: 3, kind: input, shape index: {}]
  %s4 = inlined_call_operand.hbm [shape: f32[8,32], index: 4, kind: output, shape index: {}]
  %s5 = sld [smem:[#allocation0]]
  $region34: #{tpu_custom_call.1} parent=0
    _
  %s7 = ssub.s32 1, %s5
  %s8 = scalar_select 0, %s7, %s5
  $region1: #{tpu_custom_call.1} parent=0
    #allocation2 [shape = 'u8[32768]{0}', space=vmem, size = 0x8000, scoped, tag = 'input window, operand 0, single buffered']
    #allocation3 [shape = 's32[1]{0}', space=sflag, size = 0x4, scoped, tag = 'scoped memory for tpu_custom_call.1']
    #allocation4 [shape = 's32[1]{0}', space=sflag, size = 0x4, scoped, tag = 'scoped memory for tpu_custom_call.1']
    #allocation5 [shape = 'u8[16384]{0}', space=vmem, size = 0x4000, scoped, tag = 'input window, operand 1, single buffered']
    #allocation6 [shape = 's32[1]{0}', space=sflag, size = 0x4, scoped, tag = 'scoped memory for tpu_custom_call.1']
    #allocation7 [shape = 'u8[4096]{0}', space=vmem, size = 0x1000, scoped, tag = 'output window, operand 0, single buffered']
    %9 = vsyncpa [#allocation3], 0
    %10 = vsyncpa [#allocation6], 0
    %11 = vsyncpa [#allocation4], 0
    // Predicated region
    $region2: #{tpu_custom_call.1} parent=1 // pred_check
      _
    $region3: #{tpu_custom_call.1} parent=1 // pred_check_branch
      %13 = sbr.rel (0) target = $region5
    $region4: #{tpu_custom_call.1} parent=1 // pred_region
      %15 = vsyncadd [#allocation3], 0
      %s16 = sshll.u32 %s0, 4
      %s17 = int_to_ptr.hbm [resolvable:$true] %s16
      %s18 = sshll.u32 [#allocation2], 4
      %s19 = int_to_ptr.vmem [resolvable:$true] %s18
      %24 = dma.hbm_to_vmem [thread:$0]  %s17, 1024, %s19, [#allocation3], 128, 128, 8
    $region5: #{tpu_custom_call.1} parent=1 // pred_fallthru
      _
    // Predicated region
    $region6: #{tpu_custom_call.1} parent=1 // pred_check
      _
    $region7: #{tpu_custom_call.1} parent=1 // pred_check_branch
      %26 = sbr.rel (0) target = $region9
    $region8: #{tpu_custom_call.1} parent=1 // pred_region
      %28 = vsyncadd [#allocation6], 0
      %s29 = sshll.u32 %s1, 4
      %s30 = int_to_ptr.hbm [resolvable:$true] %s29
      %s31 = sshll.u32 [#allocation5], 4
      %s32 = int_to_ptr.vmem [resolvable:$true] %s31
      %37 = dma.hbm_to_vmem [thread:$0]  %s30, 512, %s32, [#allocation6], 128, 128, 8
    $region9: #{tpu_custom_call.1} parent=1 // pred_fallthru
      _
    // Predicated region
    $region10: #{tpu_custom_call.1} parent=1 // pred_check
      _
    $region11: #{tpu_custom_call.1} parent=1 // pred_check_branch
      %39 = sbr.rel (0) target = $region13
    $region12: #{tpu_custom_call.1} parent=1 // pred_region
      _
    $region13: #{tpu_custom_call.1} parent=1 // pred_fallthru
      _
    // Predicated region
    $region14: #{tpu_custom_call.1} parent=1 // pred_check
      _
    $region15: #{tpu_custom_call.1} parent=1 // pred_check_branch
      %41 = sbr.rel (0) target = $region17
    $region16: #{tpu_custom_call.1} parent=1 // pred_region
      _
    $region17: #{tpu_custom_call.1} parent=1 // pred_fallthru
      _
    // Predicated region
    $region18: #{tpu_custom_call.1} parent=1 // pred_check
      _
    $region19: #{tpu_custom_call.1} parent=1 // pred_check_branch
      %43 = sbr.rel (0) target = $region21
    $region20: #{tpu_custom_call.1} parent=1 // pred_region
      %45 = dma.done [#allocation3], 1024
    $region21: #{tpu_custom_call.1} parent=1 // pred_fallthru
      _
    // Predicated region
    $region22: #{tpu_custom_call.1} parent=1 // pred_check
      _
    $region23: #{tpu_custom_call.1} parent=1 // pred_check_branch
      %47 = sbr.rel (0) target = $region25
    $region24: #{tpu_custom_call.1} parent=1 // pred_region
      %49 = dma.done [#allocation6], 512
    $region25: #{tpu_custom_call.1} parent=1 // pred_fallthru
      _
    %v50 = vld [vmem:[#allocation2] sm:$0xff]
    %v51 = vld [vmem:[#allocation2 + $0x8] sm:$0xff]
    %v52 = vld [vmem:[#allocation2 + $0x10] sm:$0xff]
    %v53 = vld [vmem:[#allocation2 + $0x18] sm:$0xff]
    %v54 = vld [vmem:[#allocation2 + $0x20] sm:$0xff]
    %v55 = vld [vmem:[#allocation2 + $0x28] sm:$0xff]
    %v56 = vld [vmem:[#allocation2 + $0x30] sm:$0xff]
    %v57 = vld [vmem:[#allocation2 + $0x38] sm:$0xff]
    %v58 = vmul.f32 %v50, %v50
    %v59 = vmul.f32 %v51, %v51
    %v60 = vmul.f32 %v52, %v52
    %v61 = vmul.f32 %v53, %v53
    %v62 = vmul.f32 %v54, %v54
    %v63 = vmul.f32 %v55, %v55
    %v64 = vmul.f32 %v56, %v56
    %v65 = vmul.f32 %v57, %v57
    %vm66 = vcmask 261120
    %v67 = vsel %vm66, %v58, 0.0
    %68 = vadd.xlane.f32.xlu0 %v67
    %v69 = vpop.xlane.xlu0 %68
    %v70 = vsel %vm66, %v59, 0.0
    %71 = vadd.xlane.f32.xlu0 %v70
    %v72 = vpop.xlane.xlu0 %71
    %v73 = vsel %vm66, %v60, 0.0
    %74 = vadd.xlane.f32.xlu0 %v73
    %v75 = vpop.xlane.xlu0 %74
    %v76 = vsel %vm66, %v61, 0.0
    %77 = vadd.xlane.f32.xlu0 %v76
    %v78 = vpop.xlane.xlu0 %77
    %v79 = vsel %vm66, %v62, 0.0
    %80 = vadd.xlane.f32.xlu0 %v79
    %v81 = vpop.xlane.xlu0 %80
    %v82 = vsel %vm66, %v63, 0.0
    %83 = vadd.xlane.f32.xlu0 %v82
    %v84 = vpop.xlane.xlu0 %83
    %v85 = vsel %vm66, %v64, 0.0
    %86 = vadd.xlane.f32.xlu0 %v85
    %v87 = vpop.xlane.xlu0 %86
    %v88 = vsel %vm66, %v65, 0.0
    %89 = vadd.xlane.f32.xlu0 %v88
    %v90 = vpop.xlane.xlu0 %89
    %v91 = vld [vmem:[#allocation5] sm:$0xff]
    %v92 = vld [vmem:[#allocation5 + $0x8] sm:$0xff]
    %v93 = vld [vmem:[#allocation5 + $0x10] sm:$0xff]
    %v94 = vld [vmem:[#allocation5 + $0x18] sm:$0xff]
    %v96 = vsel %vm66, %v50, 0
    %v99 = vsel %vm66, %v51, 0
    %v102 = vsel %vm66, %v52, 0
    %v105 = vsel %vm66, %v53, 0
    %v108 = vsel %vm66, %v54, 0
    %v111 = vsel %vm66, %v55, 0
    %v114 = vsel %vm66, %v56, 0
    %v117 = vsel %vm66, %v57, 0
    %119 = vmatpush.msra.mxu0 0.0
    %120 = vmatpush.msra.mxu0 0.0
    %121 = vmatpush.msra.mxu0 0.0
    %122 = vmatpush.msra.mxu0 0.0
    %123 = vmatpush.msra.mxu0 0.0
    %124 = vmatpush.msra.mxu0 0.0
    %125 = vmatpush.msra.mxu0 0.0
    %126 = vmatpush.msra.mxu0 0.0
    %127 = vmatpush.msra.mxu0 0.0
    %128 = vmatpush.msra.mxu0 0.0
    %129 = vmatpush.msra.mxu0 0.0
    %130 = vmatpush.msra.mxu0 0.0
    %131 = vmatpush.msra.mxu0 %v94
    %132 = vmatpush.msra.mxu0 %v93
    %133 = vmatpush.msra.mxu0 %v92
    %134 = vmatpush.msra.mxu0 %v91
    %135 = vmatmul.f32.gmra.mxu0 %v96
    %v136 = vpop.f32.mrf.mxu0
    %v137 = vadd.f32 0.0, %v136
    %138 = vmatmul.f32.gmra.mxu0 %v99
    %v139 = vpop.f32.mrf.mxu0
    %v140 = vadd.f32 0.0, %v139
    %141 = vmatmul.f32.gmra.mxu0 %v102
    %v142 = vpop.f32.mrf.mxu0
    %v143 = vadd.f32 0.0, %v142
    %144 = vmatmul.f32.gmra.mxu0 %v105
    %v145 = vpop.f32.mrf.mxu0
    %v146 = vadd.f32 0.0, %v145
    %147 = vmatmul.f32.gmra.mxu0 %v108
    %v148 = vpop.f32.mrf.mxu0
    %v149 = vadd.f32 0.0, %v148
    %150 = vmatmul.f32.gmra.mxu0 %v111
    %v151 = vpop.f32.mrf.mxu0
    %v152 = vadd.f32 0.0, %v151
    %153 = vmatmul.f32.gmra.mxu0 %v114
    %v154 = vpop.f32.mrf.mxu0
    %v155 = vadd.f32 0.0, %v154
    %156 = vmatmul.f32.gmra.mxu0 %v117
    %v157 = vpop.f32.mrf.mxu0
    %v158 = vadd.f32 0.0, %v157
    %159 = vdwg.mxu0
    %v160 = vmul.f32 %v69, 0.03125
    %v161 = vmul.f32 %v72, 0.03125
    %v162 = vmul.f32 %v75, 0.03125
    %v163 = vmul.f32 %v78, 0.03125
    %v164 = vmul.f32 %v81, 0.03125
    %v165 = vmul.f32 %v84, 0.03125
    %v166 = vmul.f32 %v87, 0.03125
    %v167 = vmul.f32 %v90, 0.03125
    %v168 = vmul.f32 %v137, %v137
    %v169 = vmul.f32 %v140, %v140
    %v170 = vmul.f32 %v143, %v143
    %v171 = vmul.f32 %v146, %v146
    %v172 = vmul.f32 %v149, %v149
    %v173 = vmul.f32 %v152, %v152
    %v174 = vmul.f32 %v155, %v155
    %v175 = vmul.f32 %v158, %v158
    %v176 = vsub.f32 %v160, %v168
    %v177 = vsub.f32 %v161, %v169
    %v178 = vsub.f32 %v162, %v170
    %v179 = vsub.f32 %v163, %v171
    %v180 = vsub.f32 %v164, %v172
    %v181 = vsub.f32 %v165, %v173
    %v182 = vsub.f32 %v166, %v174
    %v183 = vsub.f32 %v167, %v175
    %v184 = vmax.f32 %v176, 0.0
    %v185 = vmax.f32 %v177, 0.0
    %v186 = vmax.f32 %v178, 0.0
    %v187 = vmax.f32 %v179, 0.0
    %v188 = vmax.f32 %v180, 0.0
    %v189 = vmax.f32 %v181, 0.0
    %v190 = vmax.f32 %v182, 0.0
    %v191 = vmax.f32 %v183, 0.0
    %v192 = vadd.f32 %v184, 1e-05
    %v193 = vadd.f32 %v185, 1e-05
    %v194 = vadd.f32 %v186, 1e-05
    %v195 = vadd.f32 %v187, 1e-05
    %v196 = vadd.f32 %v188, 1e-05
    %v197 = vadd.f32 %v189, 1e-05
    %v198 = vadd.f32 %v190, 1e-05
    %v199 = vadd.f32 %v191, 1e-05
    %v200 = vrsqrt.pop %v192
    %v201 = vmul.f32 %v200, %v192
    %v202 = vmul.f32 %v201, %v200
    %v203 = vmul.f32 0.5, %v202
    %v204 = vsub.f32 1.5, %v203
    %v205 = vmul.f32 %v200, %v204
    %vm206 = vweird.f32 %v192
    %vm207 = vweird.f32 %v200
    %vm208 = vmor %vm206, %vm207
    %v209 = vsel %vm208, %v200, %v205
    %v210 = vrsqrt.pop %v193
    %v211 = vmul.f32 %v210, %v193
    %v212 = vmul.f32 %v211, %v210
    %v213 = vmul.f32 0.5, %v212
    %v214 = vsub.f32 1.5, %v213
    %v215 = vmul.f32 %v210, %v214
    %vm216 = vweird.f32 %v193
    %vm217 = vweird.f32 %v210
    %vm218 = vmor %vm216, %vm217
    %v219 = vsel %vm218, %v210, %v215
    %v220 = vrsqrt.pop %v194
    %v221 = vmul.f32 %v220, %v194
    %v222 = vmul.f32 %v221, %v220
    %v223 = vmul.f32 0.5, %v222
    %v224 = vsub.f32 1.5, %v223
    %v225 = vmul.f32 %v220, %v224
    %vm226 = vweird.f32 %v194
    %vm227 = vweird.f32 %v220
    %vm228 = vmor %vm226, %vm227
    %v229 = vsel %vm228, %v220, %v225
    %v230 = vrsqrt.pop %v195
    %v231 = vmul.f32 %v230, %v195
    %v232 = vmul.f32 %v231, %v230
    %v233 = vmul.f32 0.5, %v232
    %v234 = vsub.f32 1.5, %v233
    %v235 = vmul.f32 %v230, %v234
    %vm236 = vweird.f32 %v195
    %vm237 = vweird.f32 %v230
    %vm238 = vmor %vm236, %vm237
    %v239 = vsel %vm238, %v230, %v235
    %v240 = vrsqrt.pop %v196
    %v241 = vmul.f32 %v240, %v196
    %v242 = vmul.f32 %v241, %v240
    %v243 = vmul.f32 0.5, %v242
    %v244 = vsub.f32 1.5, %v243
    %v245 = vmul.f32 %v240, %v244
    %vm246 = vweird.f32 %v196
    %vm247 = vweird.f32 %v240
    %vm248 = vmor %vm246, %vm247
    %v249 = vsel %vm248, %v240, %v245
    %v250 = vrsqrt.pop %v197
    %v251 = vmul.f32 %v250, %v197
    %v252 = vmul.f32 %v251, %v250
    %v253 = vmul.f32 0.5, %v252
    %v254 = vsub.f32 1.5, %v253
    %v255 = vmul.f32 %v250, %v254
    %vm256 = vweird.f32 %v197
    %vm257 = vweird.f32 %v250
    %vm258 = vmor %vm256, %vm257
    %v259 = vsel %vm258, %v250, %v255
    %v260 = vrsqrt.pop %v198
    %v261 = vmul.f32 %v260, %v198
    %v262 = vmul.f32 %v261, %v260
    %v263 = vmul.f32 0.5, %v262
    %v264 = vsub.f32 1.5, %v263
    %v265 = vmul.f32 %v260, %v264
    %vm266 = vweird.f32 %v198
    %vm267 = vweird.f32 %v260
    %vm268 = vmor %vm266, %vm267
    %v269 = vsel %vm268, %v260, %v265
    %v270 = vrsqrt.pop %v199
    %v271 = vmul.f32 %v270, %v199
    %v272 = vmul.f32 %v271, %v270
    %v273 = vmul.f32 0.5, %v272
    %v274 = vsub.f32 1.5, %v273
    %v275 = vmul.f32 %v270, %v274
    %vm276 = vweird.f32 %v199
    %vm277 = vweird.f32 %v270
    %vm278 = vmor %vm276, %vm277
    %v279 = vsel %vm278, %v270, %v275
    %288 = vrot.lane.b32.xlu0 %v137, 127
    %v289 = vpop.permute.xlu0 %288
    %290 = vrot.lane.b32.xlu0 %v140, 127
    %v291 = vpop.permute.xlu0 %290
    %292 = vrot.lane.b32.xlu0 %v143, 127
    %v293 = vpop.permute.xlu0 %292
    %294 = vrot.lane.b32.xlu0 %v146, 127
    %v295 = vpop.permute.xlu0 %294
    %296 = vrot.lane.b32.xlu0 %v149, 127
    %v297 = vpop.permute.xlu0 %296
    %298 = vrot.lane.b32.xlu0 %v152, 127
    %v299 = vpop.permute.xlu0 %298
    %300 = vrot.lane.b32.xlu0 %v155, 127
    %v301 = vpop.permute.xlu0 %300
    %302 = vrot.lane.b32.xlu0 %v158, 127
    %v303 = vpop.permute.xlu0 %302
    %v312 = vmul.f32 %v209, %v289
    %v313 = vmul.f32 %v219, %v291
    %v314 = vmul.f32 %v229, %v293
    %v315 = vmul.f32 %v239, %v295
    %v316 = vmul.f32 %v249, %v297
    %v317 = vmul.f32 %v259, %v299
    %v318 = vmul.f32 %v269, %v301
    %v319 = vmul.f32 %v279, %v303
    %vm320 = vcmask 7168
    %v321 = vsel %vm320, %v312, -inf
    %v322 = vrot.slane %v321, 4
    %v323 = vmax.f32 %v321, %v322
    %v324 = vrot.slane %v323, 2
    %v325 = vmax.f32 %v323, %v324
    %v326 = vrot.slane %v325, 1
    %v327 = vmax.f32 %v325, %v326
    %v328 = vsel %vm320, %v313, -inf
    %v329 = vrot.slane %v328, 4
    %v330 = vmax.f32 %v328, %v329
    %v331 = vrot.slane %v330, 2
    %v332 = vmax.f32 %v330, %v331
    %v333 = vrot.slane %v332, 1
    %v334 = vmax.f32 %v332, %v333
    %v335 = vsel %vm320, %v314, -inf
    %v336 = vrot.slane %v335, 4
    %v337 = vmax.f32 %v335, %v336
    %v338 = vrot.slane %v337, 2
    %v339 = vmax.f32 %v337, %v338
    %v340 = vrot.slane %v339, 1
    %v341 = vmax.f32 %v339, %v340
    %v342 = vsel %vm320, %v315, -inf
    %v343 = vrot.slane %v342, 4
    %v344 = vmax.f32 %v342, %v343
    %v345 = vrot.slane %v344, 2
    %v346 = vmax.f32 %v344, %v345
    %v347 = vrot.slane %v346, 1
    %v348 = vmax.f32 %v346, %v347
    %v349 = vsel %vm320, %v316, -inf
    %v350 = vrot.slane %v349, 4
    %v351 = vmax.f32 %v349, %v350
    %v352 = vrot.slane %v351, 2
    %v353 = vmax.f32 %v351, %v352
    %v354 = vrot.slane %v353, 1
    %v355 = vmax.f32 %v353, %v354
    %v356 = vsel %vm320, %v317, -inf
    %v357 = vrot.slane %v356, 4
    %v358 = vmax.f32 %v356, %v357
    %v359 = vrot.slane %v358, 2
    %v360 = vmax.f32 %v358, %v359
    %v361 = vrot.slane %v360, 1
    %v362 = vmax.f32 %v360, %v361
    %v363 = vsel %vm320, %v318, -inf
    %v364 = vrot.slane %v363, 4
    %v365 = vmax.f32 %v363, %v364
    %v366 = vrot.slane %v365, 2
    %v367 = vmax.f32 %v365, %v366
    %v368 = vrot.slane %v367, 1
    %v369 = vmax.f32 %v367, %v368
    %v370 = vsel %vm320, %v319, -inf
    %v371 = vrot.slane %v370, 4
    %v372 = vmax.f32 %v370, %v371
    %v373 = vrot.slane %v372, 2
    %v374 = vmax.f32 %v372, %v373
    %v375 = vrot.slane %v374, 1
    %v376 = vmax.f32 %v374, %v375
    %v377 = vsub.f32 %v312, %v327
    %v378 = vsub.f32 %v313, %v334
    %v379 = vsub.f32 %v314, %v341
    %v380 = vsub.f32 %v315, %v348
    %v381 = vsub.f32 %v316, %v355
    %v382 = vsub.f32 %v317, %v362
    %v383 = vsub.f32 %v318, %v369
    %v384 = vsub.f32 %v319, %v376
    %v385 = vmul.f32 %v377, 1.442695
    %v386 = vpow.pop %v385
    %v387 = vmul.f32 %v378, 1.442695
    %v388 = vpow.pop %v387
    %v389 = vmul.f32 %v379, 1.442695
    %v390 = vpow.pop %v389
    %v391 = vmul.f32 %v380, 1.442695
    %v392 = vpow.pop %v391
    %v393 = vmul.f32 %v381, 1.442695
    %v394 = vpow.pop %v393
    %v395 = vmul.f32 %v382, 1.442695
    %v396 = vpow.pop %v395
    %v397 = vmul.f32 %v383, 1.442695
    %v398 = vpow.pop %v397
    %v399 = vmul.f32 %v384, 1.442695
    %v400 = vpow.pop %v399
    %v401 = vsel %vm320, %v386, 0.0
    %v402 = vrot.slane %v401, 4
    %v403 = vadd.f32 %v401, %v402
    %v404 = vrot.slane %v403, 2
    %v405 = vadd.f32 %v403, %v404
    %v406 = vrot.slane %v405, 1
    %v407 = vadd.f32 %v405, %v406
    %v408 = vsel %vm320, %v388, 0.0
    %v409 = vrot.slane %v408, 4
    %v410 = vadd.f32 %v408, %v409
    %v411 = vrot.slane %v410, 2
    %v412 = vadd.f32 %v410, %v411
    %v413 = vrot.slane %v412, 1
    %v414 = vadd.f32 %v412, %v413
    %v415 = vsel %vm320, %v390, 0.0
    %v416 = vrot.slane %v415, 4
    %v417 = vadd.f32 %v415, %v416
    %v418 = vrot.slane %v417, 2
    %v419 = vadd.f32 %v417, %v418
    %v420 = vrot.slane %v419, 1
    %v421 = vadd.f32 %v419, %v420
    %v422 = vsel %vm320, %v392, 0.0
    %v423 = vrot.slane %v422, 4
    %v424 = vadd.f32 %v422, %v423
    %v425 = vrot.slane %v424, 2
    %v426 = vadd.f32 %v424, %v425
    %v427 = vrot.slane %v426, 1
    %v428 = vadd.f32 %v426, %v427
    %v429 = vsel %vm320, %v394, 0.0
    %v430 = vrot.slane %v429, 4
    %v431 = vadd.f32 %v429, %v430
    %v432 = vrot.slane %v431, 2
    %v433 = vadd.f32 %v431, %v432
    %v434 = vrot.slane %v433, 1
    %v435 = vadd.f32 %v433, %v434
    %v436 = vsel %vm320, %v396, 0.0
    %v437 = vrot.slane %v436, 4
    %v438 = vadd.f32 %v436, %v437
    %v439 = vrot.slane %v438, 2
    %v440 = vadd.f32 %v438, %v439
    %v441 = vrot.slane %v440, 1
    %v442 = vadd.f32 %v440, %v441
    %v443 = vsel %vm320, %v398, 0.0
    %v444 = vrot.slane %v443, 4
    %v445 = vadd.f32 %v443, %v444
    %v446 = vrot.slane %v445, 2
    %v447 = vadd.f32 %v445, %v446
    %v448 = vrot.slane %v447, 1
    %v449 = vadd.f32 %v447, %v448
    %v450 = vsel %vm320, %v400, 0.0
    %v451 = vrot.slane %v450, 4
    %v452 = vadd.f32 %v450, %v451
    %v453 = vrot.slane %v452, 2
    %v454 = vadd.f32 %v452, %v453
    %v455 = vrot.slane %v454, 1
    %v456 = vadd.f32 %v454, %v455
    %v457 = vrcp.pop %v407
    %v458 = vrcp.pop %v414
    %v459 = vrcp.pop %v421
    %v460 = vrcp.pop %v428
    %v461 = vrcp.pop %v435
    %v462 = vrcp.pop %v442
    %v463 = vrcp.pop %v449
    %v464 = vrcp.pop %v456
    %v465 = vmul.f32 %v386, %v457
    %v466 = vmul.f32 %v388, %v458
    %v467 = vmul.f32 %v390, %v459
    %v468 = vmul.f32 %v392, %v460
    %v469 = vmul.f32 %v394, %v461
    %v470 = vmul.f32 %v396, %v462
    %v471 = vmul.f32 %v398, %v463
    %v472 = vmul.f32 %v400, %v464
    %v473 = vmul.f32 %v465, %v209
    %v474 = vmul.f32 %v466, %v219
    %v475 = vmul.f32 %v467, %v229
    %v476 = vmul.f32 %v468, %v239
    %v477 = vmul.f32 %v469, %v249
    %v478 = vmul.f32 %v470, %v259
    %v479 = vmul.f32 %v471, %v269
    %v480 = vmul.f32 %v472, %v279
    %482 = vset.pattern.permute.xlu0 0
    %483 = vperm.xlu0 %482, %v473
    %v484 = vpop.permute.xlu0 %483
    %487 = vset.pattern.permute.xlu0 0
    %488 = vperm.xlu0 %487, %v474
    %v489 = vpop.permute.xlu0 %488
    %492 = vset.pattern.permute.xlu0 0
    %493 = vperm.xlu0 %492, %v475
    %v494 = vpop.permute.xlu0 %493
    %497 = vset.pattern.permute.xlu0 0
    %498 = vperm.xlu0 %497, %v476
    %v499 = vpop.permute.xlu0 %498
    %502 = vset.pattern.permute.xlu0 0
    %503 = vperm.xlu0 %502, %v477
    %v504 = vpop.permute.xlu0 %503
    %507 = vset.pattern.permute.xlu0 0
    %508 = vperm.xlu0 %507, %v478
    %v509 = vpop.permute.xlu0 %508
    %512 = vset.pattern.permute.xlu0 0
    %513 = vperm.xlu0 %512, %v479
    %v514 = vpop.permute.xlu0 %513
    %517 = vset.pattern.permute.xlu0 0
    %518 = vperm.xlu0 %517, %v480
    %v519 = vpop.permute.xlu0 %518
    %v521 = vmul.f32 %v484, %v50
    %v522 = vmul.f32 %v489, %v51
    %v523 = vmul.f32 %v494, %v52
    %v524 = vmul.f32 %v499, %v53
    %v525 = vmul.f32 %v504, %v54
    %v526 = vmul.f32 %v509, %v55
    %v527 = vmul.f32 %v514, %v56
    %v528 = vmul.f32 %v519, %v57
    %v529 = vsel %vm66, %v521, 0.0
    %v530 = vrot.slane %v529, 4
    %v531 = vadd.f32 %v529, %v530
    %v532 = vrot.slane %v531, 2
    %v533 = vadd.f32 %v531, %v532
    %v534 = vrot.slane %v533, 1
    %v535 = vadd.f32 %v533, %v534
    %v536 = vsel %vm66, %v522, 0.0
    %v537 = vrot.slane %v536, 4
    %v538 = vadd.f32 %v536, %v537
    %v539 = vrot.slane %v538, 2
    %v540 = vadd.f32 %v538, %v539
    %v541 = vrot.slane %v540, 1
    %v542 = vadd.f32 %v540, %v541
    %v543 = vsel %vm66, %v523, 0.0
    %v544 = vrot.slane %v543, 4
    %v545 = vadd.f32 %v543, %v544
    %v546 = vrot.slane %v545, 2
    %v547 = vadd.f32 %v545, %v546
    %v548 = vrot.slane %v547, 1
    %v549 = vadd.f32 %v547, %v548
    %v550 = vsel %vm66, %v524, 0.0
    %v551 = vrot.slane %v550, 4
    %v552 = vadd.f32 %v550, %v551
    %v553 = vrot.slane %v552, 2
    %v554 = vadd.f32 %v552, %v553
    %v555 = vrot.slane %v554, 1
    %v556 = vadd.f32 %v554, %v555
    %v557 = vsel %vm66, %v525, 0.0
    %v558 = vrot.slane %v557, 4
    %v559 = vadd.f32 %v557, %v558
    %v560 = vrot.slane %v559, 2
    %v561 = vadd.f32 %v559, %v560
    %v562 = vrot.slane %v561, 1
    %v563 = vadd.f32 %v561, %v562
    %v564 = vsel %vm66, %v526, 0.0
    %v565 = vrot.slane %v564, 4
    %v566 = vadd.f32 %v564, %v565
    %v567 = vrot.slane %v566, 2
    %v568 = vadd.f32 %v566, %v567
    %v569 = vrot.slane %v568, 1
    %v570 = vadd.f32 %v568, %v569
    %v571 = vsel %vm66, %v527, 0.0
    %v572 = vrot.slane %v571, 4
    %v573 = vadd.f32 %v571, %v572
    %v574 = vrot.slane %v573, 2
    %v575 = vadd.f32 %v573, %v574
    %v576 = vrot.slane %v575, 1
    %v577 = vadd.f32 %v575, %v576
    %v578 = vsel %vm66, %v528, 0.0
    %v579 = vrot.slane %v578, 4
    %v580 = vadd.f32 %v578, %v579
    %v581 = vrot.slane %v580, 2
    %v582 = vadd.f32 %v580, %v581
    %v583 = vrot.slane %v582, 1
    %v584 = vadd.f32 %v582, %v583
    %v585 = vmul.f32 %v473, %v137
    %v586 = vmul.f32 %v474, %v140
    %v587 = vmul.f32 %v475, %v143
    %v588 = vmul.f32 %v476, %v146
    %v589 = vmul.f32 %v477, %v149
    %v590 = vmul.f32 %v478, %v152
    %v591 = vmul.f32 %v479, %v155
    %v592 = vmul.f32 %v480, %v158
    %v593 = vsel %vm320, %v585, 0.0
    %v594 = vrot.slane %v593, 4
    %v595 = vadd.f32 %v593, %v594
    %v596 = vrot.slane %v595, 2
    %v597 = vadd.f32 %v595, %v596
    %v598 = vrot.slane %v597, 1
    %v599 = vadd.f32 %v597, %v598
    %v600 = vsel %vm320, %v586, 0.0
    %v601 = vrot.slane %v600, 4
    %v602 = vadd.f32 %v600, %v601
    %v603 = vrot.slane %v602, 2
    %v604 = vadd.f32 %v602, %v603
    %v605 = vrot.slane %v604, 1
    %v606 = vadd.f32 %v604, %v605
    %v607 = vsel %vm320, %v587, 0.0
    %v608 = vrot.slane %v607, 4
    %v609 = vadd.f32 %v607, %v608
    %v610 = vrot.slane %v609, 2
    %v611 = vadd.f32 %v609, %v610
    %v612 = vrot.slane %v611, 1
    %v613 = vadd.f32 %v611, %v612
    %v614 = vsel %vm320, %v588, 0.0
    %v615 = vrot.slane %v614, 4
    %v616 = vadd.f32 %v614, %v615
    %v617 = vrot.slane %v616, 2
    %v618 = vadd.f32 %v616, %v617
    %v619 = vrot.slane %v618, 1
    %v620 = vadd.f32 %v618, %v619
    %v621 = vsel %vm320, %v589, 0.0
    %v622 = vrot.slane %v621, 4
    %v623 = vadd.f32 %v621, %v622
    %v624 = vrot.slane %v623, 2
    %v625 = vadd.f32 %v623, %v624
    %v626 = vrot.slane %v625, 1
    %v627 = vadd.f32 %v625, %v626
    %v628 = vsel %vm320, %v590, 0.0
    %v629 = vrot.slane %v628, 4
    %v630 = vadd.f32 %v628, %v629
    %v631 = vrot.slane %v630, 2
    %v632 = vadd.f32 %v630, %v631
    %v633 = vrot.slane %v632, 1
    %v634 = vadd.f32 %v632, %v633
    %v635 = vsel %vm320, %v591, 0.0
    %v636 = vrot.slane %v635, 4
    %v637 = vadd.f32 %v635, %v636
    %v638 = vrot.slane %v637, 2
    %v639 = vadd.f32 %v637, %v638
    %v640 = vrot.slane %v639, 1
    %v641 = vadd.f32 %v639, %v640
    %v642 = vsel %vm320, %v592, 0.0
    %v643 = vrot.slane %v642, 4
    %v644 = vadd.f32 %v642, %v643
    %v645 = vrot.slane %v644, 2
    %v646 = vadd.f32 %v644, %v645
    %v647 = vrot.slane %v646, 1
    %v648 = vadd.f32 %v646, %v647
    %650 = vset.pattern.permute.xlu0 0
    %651 = vperm.xlu0 %650, %v599
    %v652 = vpop.permute.xlu0 %651
    %655 = vset.pattern.permute.xlu0 0
    %656 = vperm.xlu0 %655, %v606
    %v657 = vpop.permute.xlu0 %656
    %660 = vset.pattern.permute.xlu0 0
    %661 = vperm.xlu0 %660, %v613
    %v662 = vpop.permute.xlu0 %661
    %665 = vset.pattern.permute.xlu0 0
    %666 = vperm.xlu0 %665, %v620
    %v667 = vpop.permute.xlu0 %666
    %670 = vset.pattern.permute.xlu0 0
    %671 = vperm.xlu0 %670, %v627
    %v672 = vpop.permute.xlu0 %671
    %675 = vset.pattern.permute.xlu0 0
    %676 = vperm.xlu0 %675, %v634
    %v677 = vpop.permute.xlu0 %676
    %680 = vset.pattern.permute.xlu0 0
    %681 = vperm.xlu0 %680, %v641
    %v682 = vpop.permute.xlu0 %681
    %685 = vset.pattern.permute.xlu0 0
    %686 = vperm.xlu0 %685, %v648
    %v687 = vpop.permute.xlu0 %686
    %v689 = vsub.f32 %v535, %v652
    %v690 = vsub.f32 %v542, %v657
    %v691 = vsub.f32 %v549, %v662
    %v692 = vsub.f32 %v556, %v667
    %v693 = vsub.f32 %v563, %v672
    %v694 = vsub.f32 %v570, %v677
    %v695 = vsub.f32 %v577, %v682
    %v696 = vsub.f32 %v584, %v687
    %v697 = vld [vmem:[%s2] sm:$0x1]
    %v699 = vperm.slane %v697, 0
    %vm709 = vcmask 1041409
    %v710 = vsel %vm709, %v690, %v689
    %vm711 = vcmask 1042434
    %v712 = vsel %vm711, %v691, %v710
    %vm713 = vcmask 1043459
    %v714 = vsel %vm713, %v692, %v712
    %vm715 = vcmask 1044484
    %v716 = vsel %vm715, %v693, %v714
    %vm717 = vcmask 1045509
    %v718 = vsel %vm717, %v694, %v716
    %vm719 = vcmask 1046534
    %v720 = vsel %vm719, %v695, %v718
    %vm721 = vcmask 1047559
    %v722 = vsel %vm721, %v696, %v720
    %v724 = vmul.f32 %v699, %v722
    %v725 = vld [vmem:[%s3] sm:$0x1]
    %v727 = vperm.slane %v725, 0
    %v729 = vadd.f32 %v724, %v727
    %730 = vst.msk [vmem:[#allocation7] sm:$0xff] %vm66, %v729
    // Predicated region
    $region26: #{tpu_custom_call.1} parent=1 // pred_check
      _
    $region27: #{tpu_custom_call.1} parent=1 // pred_check_branch
      %732 = sbr.rel (0) target = $region29
    $region28: #{tpu_custom_call.1} parent=1 // pred_region
      %734 = vsyncadd [#allocation4], 0
      %s736 = sshll.u32 [#allocation7], 4
      %s737 = int_to_ptr.vmem [resolvable:$true] %s736
      %s738 = sshll.u32 %s4, 4
      %s739 = int_to_ptr.hbm [resolvable:$true] %s738
      %741 = dma.vmem_to_hbm [thread:$0]  %s737, 128, %s739, [#allocation4]
    $region29: #{tpu_custom_call.1} parent=1 // pred_fallthru
      _
    // Predicated region
    $region30: #{tpu_custom_call.1} parent=1 // pred_check
      _
    $region31: #{tpu_custom_call.1} parent=1 // pred_check_branch
      %743 = sbr.rel (0) target = $region33
    $region32: #{tpu_custom_call.1} parent=1 // pred_region
      %745 = dma.done [#allocation4], 128
    $region33: #{tpu_custom_call.1} parent=1 // pred_fallthru
      _
    %746 = vsyncpa [#allocation3], 1
    %747 = vsyncpa [#allocation6], 1
    %748 = vsyncpa [#allocation4], 1

</llo_original>
